<compile_context>
chip_gen: v7x
topology: tpu7x:2x2x1
jax: 0.10.0
libtpu: 0.0.40
codegen_flags: <defaults>
</compile_context>

<pallas_src>
import jax
import jax.numpy as jnp
from jax.experimental import pallas as pl
from jax.experimental.pallas import tpu as pltpu


def hubbard_embedding_kernel(scal_ref, mix_ref, out_ref):
    """One broadcast-multiply, one full-width store.  All operands in VMEM.

    scal_ref : (batch, seq)        float32   concat(occupations^T, params^T)
    mix_ref  : (seq, embed)        float32   block-structured mixing matrix
    out_ref  : (batch, seq, embed) float32   output (batch-major, lane-dense)
    """
    out_ref[...] = scal_ref[...][:, :, None] * mix_ref[...][None, :, :]


def _build_scal_and_mix(params, occupations, occupation_base, n_param_to_target):
    """Constant-shaped prep in XLA (kept out of the kernel hot path)."""
    n_params = params.shape[0]
    n_sites = occupations.shape[0]
    token_dims = occupation_base.shape[0]
    param_dims = n_param_to_target.shape[0]
    seq = n_sites + n_params
    embed = token_dims + param_dims

    # scal[b, s] = occupations[s, b] for s < n_sites, else params[s - n_sites, b]
    scal = jnp.concatenate(
        [occupations.astype(jnp.float32).T, params.astype(jnp.float32).T], axis=1
    )  # (batch, seq)

    # Block-structured mixing matrix (zeros in the two dead corner blocks).
    mix = jnp.zeros((seq, embed), jnp.float32)
    mix = mix.at[:n_sites, :token_dims].set(
        jnp.broadcast_to(occupation_base.astype(jnp.float32)[None, :],
                         (n_sites, token_dims)))
    mix = mix.at[n_sites:, token_dims:].set(
        jnp.transpose(n_param_to_target).astype(jnp.float32))
    return scal, mix


def hubbard_embedding_bse(params, occupations, occupation_base, n_param_to_target):
    """Batch-major variant: returns (batch, seq, embed) with NO epilogue transpose.

    Preferred entry point when the downstream consumer can accept batch-major.
    """
    n_params, batch = params.shape
    n_sites = occupations.shape[0]
    token_dims = occupation_base.shape[0]
    param_dims = n_param_to_target.shape[0]
    seq = n_sites + n_params
    embed = token_dims + param_dims

    scal, mix = _build_scal_and_mix(
        params, occupations, occupation_base, n_param_to_target)

    out_bytes = batch * seq * embed * 4
    cost = pl.CostEstimate(
        flops=batch * seq * embed,            # one multiply per output element
        transcendentals=0,
        bytes_accessed=scal.size * 4 + mix.size * 4 + out_bytes,
    )

    return pl.pallas_call(
        hubbard_embedding_kernel,
        out_shape=jax.ShapeDtypeStruct((batch, seq, embed), jnp.float32),
        in_specs=[
            pl.BlockSpec(memory_space=pltpu.MemorySpace.VMEM),  # scal
            pl.BlockSpec(memory_space=pltpu.MemorySpace.VMEM),  # mixing matrix
        ],
        out_specs=pl.BlockSpec(memory_space=pltpu.MemorySpace.VMEM),
        cost_estimate=cost,
    )(scal, mix)
    # TODO(synk): if batch/seq/embed ever scale ~100x (batch >= 8, embed a multiple
    # of 128), add a grid over the leading axis with dimension_semantics=("parallel",)
    # and pick per-generation block sizes (v7x has 64 MiB VMEM vs 128 MiB v5e/v6e).


def hubbard_embedding(params, occupations, occupation_base, n_param_to_target):
    """Module-contract entry point: returns (seq, batch, embed) like the PyTorch forward.

    params      : (n_params, batch) float
    occupations : (n_sites, batch)  int
    """
    out_bse = hubbard_embedding_bse(
        params, occupations, occupation_base, n_param_to_target)
    # Tiny XLA transpose to restore the module's (seq, batch, embed) contract.
    # Consumers that accept batch-major should use hubbard_embedding_bse() and skip it.
    return jnp.transpose(out_bse, (1, 0, 2))


def hubbard_embedding_reference(params, occupations, occupation_base, n_param_to_target):
    """Pure-JAX reference mirroring the PyTorch forward."""
    n_params, batch = params.shape
    n_sites = occupations.shape[0]
    token_dims = occupation_base.shape[0]
    param_dims = n_param_to_target.shape[0]
    seq = n_sites + n_params
    embed = token_dims + param_dims

    token_buf = occupations.astype(jnp.float32)[:, :, None] * occupation_base[None, None, :]
    param_buf = params[:, :, None] * n_param_to_target.T[:, None, :]

    buf = jnp.zeros((seq, batch, embed), jnp.float32)
    buf = buf.at[:n_sites, :, :token_dims].set(token_buf)
    buf = buf.at[n_sites:, :, token_dims:].set(param_buf)
    return buf


if __name__ == "__main__":
    # Module config (small, consistent with the forward pass).
    token_dims = 32
    param_dims = 16
    n_params = 4
    n_sites = 12
    batch = 2
    # max_len / wavelen_fact only feed PositionEncoding, which is unused in forward().
    # TODO(synk): PositionEncoding (self.pe) and interaction_weights are dead in forward(); omitted.

    key = jax.random.PRNGKey(0)
    k_base, k_w, k_params, k_occ = jax.random.split(key, 4)

    # Deterministic "parameters" (nn.Parameter(torch.randn(...)) analogues).
    occupation_base = jax.random.normal(k_base, (token_dims,), dtype=jnp.float32)
    n_param_to_target = jax.random.normal(k_w, (param_dims, n_params), dtype=jnp.float32)

    # Inputs: params (n_params, batch) float; occupations (n_sites, batch) int.
    params = jax.random.normal(k_params, (n_params, batch), dtype=jnp.float32)
    occupations = jax.random.randint(k_occ, (n_sites, batch), 0, 3, dtype=jnp.int32)

    out = hubbard_embedding(params, occupations, occupation_base, n_param_to_target)
    out = jax.block_until_ready(out)

    ref = hubbard_embedding_reference(params, occupations, occupation_base, n_param_to_target)
    assert out.shape == (n_sites + n_params, batch, token_dims + param_dims)
    assert out.dtype == jnp.float32
    assert jnp.allclose(out, ref, atol=1e-6, rtol=1e-6), "mismatch vs reference"

    # Also verify the transpose-free batch-major variant.
    out_bse = jax.block_until_ready(
        hubbard_embedding_bse(params, occupations, occupation_base, n_param_to_target))
    assert jnp.allclose(out_bse, jnp.transpose(ref, (1, 0, 2)), atol=1e-6, rtol=1e-6)

    print("KERNEL_OK")
</pallas_src>

<mosaic_0001>
module attributes {stable_mosaic.version = 11 : i64} {
  func.func @hubbard_embedding_kernel(%arg0: memref<2x16xf32, #tpu.memory_space<vmem>>, %arg1: memref<16x48xf32, #tpu.memory_space<vmem>>, %arg2: memref<2x16x48xf32, #tpu.memory_space<vmem>>) attributes {dimension_semantics = [], scalar_prefetch = 0 : i64, scratch_operands = 0 : i64, tpu.core_type = #tpu.core_type<tc>} {
    %c0 = arith.constant 0 : index
    %c0_0 = arith.constant 0 : index
    %0 = vector.load %arg0[%c0, %c0_0] : memref<2x16xf32, #tpu.memory_space<vmem>>, vector<2x16xf32>
    %1 = vector.shape_cast %0 : vector<2x16xf32> to vector<2x16x1xf32>
    %c0_1 = arith.constant 0 : index
    %c0_2 = arith.constant 0 : index
    %2 = vector.load %arg1[%c0_1, %c0_2] : memref<16x48xf32, #tpu.memory_space<vmem>>, vector<16x48xf32>
    %3 = vector.shape_cast %2 : vector<16x48xf32> to vector<1x16x48xf32>
    %4 = vector.broadcast %1 : vector<2x16x1xf32> to vector<2x16x48xf32>
    %5 = vector.broadcast %3 : vector<1x16x48xf32> to vector<2x16x48xf32>
    %6 = arith.mulf %4, %5 : vector<2x16x48xf32>
    %c0_3 = arith.constant 0 : index
    %c0_4 = arith.constant 0 : index
    %c0_5 = arith.constant 0 : index
    %7 = vector.load %arg2[%c0_3, %c0_4, %c0_5] : memref<2x16x48xf32, #tpu.memory_space<vmem>>, vector<2x16x48xf32>
    tpu.vector_store %arg2[%c0_3, %c0_4, %c0_5], %6 {strides = array<i32>} : memref<2x16x48xf32, #tpu.memory_space<vmem>>, vector<2x16x48xf32>,
    return
  }
}

</mosaic_0001>

<llo_original>
// kernel: tpu_custom_call.1
$region0: #{tpu_custom_call.1}
  #allocation0 [shape = 'u32[]', space=smem, size = 0x4, offset = 0x4, fixed_abs, tag = 'smem constant byte address 0x4 - core index']
  #allocation1 [shape = 'u32[144,128]{1,0:T(1,128)}', space=vmem, size = 0x12000, scoped, tag = 'internal scratch']
  %s0 = inlined_call_operand.hbm [shape: f32[2,16], index: 0, kind: input, shape index: {}]
  %s1 = inlined_call_operand.hbm [shape: f32[16,48], index: 1, kind: input, shape index: {}]
  %s2 = inlined_call_operand.hbm [shape: f32[2,16,48], index: 2, kind: output, shape index: {}]
  %s3 = sld [smem:[#allocation0]]
  $region26: #{tpu_custom_call.1} parent=0
    _
  %s5 = ssub.s32 1, %s3
  %s6 = scalar_select 0, %s5, %s3
  $region1: #{tpu_custom_call.1} parent=0
    #allocation2 [shape = 'u8[1024]{0}', space=vmem, size = 0x400, scoped, tag = 'input window, operand 0, single buffered']
    #allocation3 [shape = 's32[1]{0}', space=sflag, size = 0x4, scoped, tag = 'scoped memory for tpu_custom_call.1']
    #allocation4 [shape = 's32[1]{0}', space=sflag, size = 0x4, scoped, tag = 'scoped memory for tpu_custom_call.1']
    #allocation5 [shape = 'u8[8192]{0}', space=vmem, size = 0x2000, scoped, tag = 'input window, operand 1, single buffered']
    #allocation6 [shape = 's32[1]{0}', space=sflag, size = 0x4, scoped, tag = 'scoped memory for tpu_custom_call.1']
    #allocation7 [shape = 'u8[16384]{0}', space=vmem, size = 0x4000, scoped, tag = 'output window, operand 0, single buffered']
    %7 = vsyncpa [#allocation3], 0
    %8 = vsyncpa [#allocation6], 0
    %9 = vsyncpa [#allocation4], 0
    // Predicated region
    $region2: #{tpu_custom_call.1} parent=1 // pred_check
      _
    $region3: #{tpu_custom_call.1} parent=1 // pred_check_branch
      %11 = sbr.rel (0) target = $region5
    $region4: #{tpu_custom_call.1} parent=1 // pred_region
      %s13 = ssub.s32 32, 32
      %14 = vsyncadd [#allocation3], %s13
      %s16 = sshll.u32 [#allocation2], 4
      %s17 = int_to_ptr.vmem [resolvable:$true] %s16
      %19 = dma.hbm_to_vmem [thread:$0]  %s0, 32, %s17, [#allocation3]
    $region5: #{tpu_custom_call.1} parent=1 // pred_fallthru
      _
    // Predicated region
    $region6: #{tpu_custom_call.1} parent=1 // pred_check
      _
    $region7: #{tpu_custom_call.1} parent=1 // pred_check_branch
      %21 = sbr.rel (0) target = $region9
    $region8: #{tpu_custom_call.1} parent=1 // pred_region
      %s23 = ssub.s32 256, 256
      %24 = vsyncadd [#allocation6], %s23
      %s25 = sshll.u32 [#allocation5], 4
      %s26 = int_to_ptr.vmem [resolvable:$true] %s25
      %31 = dma.hbm_to_vmem [thread:$0]  %s1, 256, %s26, [#allocation6], 128, 128, 8
    $region9: #{tpu_custom_call.1} parent=1 // pred_fallthru
      _
    // Predicated region
    $region10: #{tpu_custom_call.1} parent=1 // pred_check
      _
    $region11: #{tpu_custom_call.1} parent=1 // pred_check_branch
      %33 = sbr.rel (0) target = $region13
    $region12: #{tpu_custom_call.1} parent=1 // pred_region
      %34 = dma.done [#allocation3], 32
    $region13: #{tpu_custom_call.1} parent=1 // pred_fallthru
      _
    // Predicated region
    $region14: #{tpu_custom_call.1} parent=1 // pred_check
      _
    $region15: #{tpu_custom_call.1} parent=1 // pred_check_branch
      %36 = sbr.rel (0) target = $region17
    $region16: #{tpu_custom_call.1} parent=1 // pred_region
      %37 = dma.done [#allocation6], 256
    $region17: #{tpu_custom_call.1} parent=1 // pred_fallthru
      _
    %v38 = vld [vmem:[#allocation2] sm:$0x3]
    %v39 = vlaneseq
    %v40 = vshrl.u32 %v39, 7
    %v41 = vsub.s32 0, %v40
    %v42 = vrot.slane %v38, %v41
    %44 = vbcast.lane.b32.xlu0 %v42, 256
    %v45 = vpop.permute.xlu0 %44
    %s47 = sor.u32 256, 8
    %48 = vbcast.lane.b32.xlu0 %v42, %s47
    %v49 = vpop.permute.xlu0 %48
    %v50 = vlaneseq
    %v51 = vshrl.u32 %v50, 7
    %v52 = vsub.s32 1, %v51
    %v53 = vrot.slane %v38, %v52
    %55 = vbcast.lane.b32.xlu0 %v53, 256
    %v56 = vpop.permute.xlu0 %55
    %s58 = sor.u32 256, 8
    %59 = vbcast.lane.b32.xlu0 %v53, %s58
    %v60 = vpop.permute.xlu0 %59
    %v61 = vld [vmem:[#allocation5] sm:$0xff]
    %v62 = vld [vmem:[#allocation5 + $0x8] sm:$0xff]
    %v63 = vmul.f32 %v45, %v61
    %v64 = vmul.f32 %v49, %v62
    %v65 = vmul.f32 %v56, %v61
    %v66 = vmul.f32 %v60, %v62
    %vm67 = vcmask 392192
    %68 = vst.msk [vmem:[#allocation7] sm:$0xff] %vm67, %v63
    %69 = vst.msk [vmem:[#allocation7 + $0x8] sm:$0xff] %vm67, %v64
    %70 = vst.msk [vmem:[#allocation7 + $0x10] sm:$0xff] %vm67, %v65
    %71 = vst.msk [vmem:[#allocation7 + $0x18] sm:$0xff] %vm67, %v66
    // Predicated region
    $region18: #{tpu_custom_call.1} parent=1 // pred_check
      _
    $region19: #{tpu_custom_call.1} parent=1 // pred_check_branch
      %73 = sbr.rel (0) target = $region21
    $region20: #{tpu_custom_call.1} parent=1 // pred_region
      %s75 = ssub.s32 512, 512
      %76 = vsyncadd [#allocation4], %s75
      %s77 = sshll.u32 [#allocation7], 4
      %s78 = int_to_ptr.vmem [resolvable:$true] %s77
      %83 = dma.vmem_to_hbm [thread:$0]  %s78, 512, %s2, [#allocation4], 128, 128, 8
    $region21: #{tpu_custom_call.1} parent=1 // pred_fallthru
      _
    // Predicated region
    $region22: #{tpu_custom_call.1} parent=1 // pred_check
      _
    $region23: #{tpu_custom_call.1} parent=1 // pred_check_branch
      %85 = sbr.rel (0) target = $region25
    $region24: #{tpu_custom_call.1} parent=1 // pred_region
      %86 = dma.done [#allocation4], 512
    $region25: #{tpu_custom_call.1} parent=1 // pred_fallthru
      _
    %87 = vsyncpa [#allocation3], 1
    %88 = vsyncpa [#allocation6], 1
    %89 = vsyncpa [#allocation4], 1

</llo_original>
